<compile_context>
chip_gen: v7x
topology: tpu7x:2x2x1
jax: 0.10.0
libtpu: 0.0.40
codegen_flags: <defaults>
</compile_context>

<pallas_src>
import functools
import math

import jax
import jax.numpy as jnp
from jax.experimental import pallas as pl
from jax.experimental.pallas import tpu as pltpu

_EPS = 1e-5


# ----------------------------- kernels -------------------------------------


def _ln_kernel_bias(x_ref, w_ref, b_ref, o_ref, *, inv_h, eps):
    # x_ref: (tile_rows, hidden), w_ref/b_ref: (1, hidden)
    x = x_ref[...].astype(jnp.float32)
    mean = jnp.sum(x, axis=-1, keepdims=True) * inv_h
    xc = x - mean
    var = jnp.sum(xc * xc, axis=-1, keepdims=True) * inv_h  # biased (PyTorch)
    inv = jax.lax.rsqrt(var + eps)
    y = xc * inv
    y = y * w_ref[...].astype(jnp.float32) + b_ref[...].astype(jnp.float32)
    o_ref[...] = y.astype(o_ref.dtype)


def _ln_kernel_nobias(x_ref, w_ref, o_ref, *, inv_h, eps):
    x = x_ref[...].astype(jnp.float32)
    mean = jnp.sum(x, axis=-1, keepdims=True) * inv_h
    xc = x - mean
    var = jnp.sum(xc * xc, axis=-1, keepdims=True) * inv_h
    inv = jax.lax.rsqrt(var + eps)
    y = xc * inv * w_ref[...].astype(jnp.float32)
    o_ref[...] = y.astype(o_ref.dtype)


# --------------------------- tiling helpers ---------------------------------


def _round_up(x, m):
    return ((x + m - 1) // m) * m


def _tpu_info():
    try:
        return pltpu.get_tpu_info()
    except Exception:
        return None


def _vmem_capacity_bytes(info):
    if info is not None:
        v = getattr(info, "vmem_capacity_bytes", None)
        if v:
            return int(v)
    return 64 * 1024 * 1024  # conservative: v7x per-TensorCore VMEM


def _num_tensorcores(info):
    """Best-effort TensorCore-per-chip query (v7x has 2); default 1."""
    if info is not None:
        for attr in ("num_cores", "num_tensorcores", "tensorcore_count",
                     "num_cores_per_chip", "cores_per_chip"):
            v = getattr(info, attr, None)
            if isinstance(v, int) and v > 0:
                return v
    try:
        v = getattr(jax.devices()[0], "num_cores", None)
        if isinstance(v, int) and v > 0:
            return v
    except Exception:
        pass
    return 1


def _pick_tile_rows(rows, hidden, dtype_bytes, budget, row_align, num_cores):
    """Pick the row tile.  Returns None if even a minimal block busts budget."""
    # Working set per row: double-buffered in + out blocks (dtype) plus
    # ~3x hidden of f32 intermediates inside the kernel body.
    per_row_bytes = hidden * (4 * dtype_bytes + 3 * 4)
    if per_row_bytes * min(rows, row_align) > budget:
        return None
    target_block_bytes = 16 * 1024 * 1024
    cap = min(target_block_bytes // max(hidden * dtype_bytes, 1),
              budget // per_row_bytes)
    cap = max(cap, row_align)
    if cap >= rows:
        # Whole problem fits one block.  On multi-TC chips (v7x) split into
        # two steps so ("parallel",) can shard across both TensorCores; on
        # single-TC chips one block avoids pointless pipeline overhead.
        if num_cores >= 2 and rows > row_align:
            return _round_up(-(-rows // 2), row_align)
        return rows  # full-extent row block (always legal)
    return (cap // row_align) * row_align


# ---------------------------- XLA fallback ----------------------------------


def _layer_norm_xla(x, weight, bias, eps):
    x32 = x.astype(jnp.float32)
    mean = jnp.mean(x32, axis=-1, keepdims=True)
    xc = x32 - mean
    var = jnp.mean(xc * xc, axis=-1, keepdims=True)
    y = xc * jax.lax.rsqrt(var + eps) * weight.astype(jnp.float32)
    if bias is not None:
        y = y + bias.astype(jnp.float32)
    return y.astype(x.dtype)


# ------------------------------ wrapper -------------------------------------


def layer_norm(x, weight, bias=None, *, eps=_EPS, tile_rows=None):
    """LayerNorm over the last dimension of x (any leading shape)."""
    orig_shape = x.shape
    hidden = orig_shape[-1]
    rows = math.prod(orig_shape[:-1]) if len(orig_shape) > 1 else 1
    dtype = x.dtype
    dtype_bytes = jnp.dtype(dtype).itemsize
    row_align = {4: 8, 2: 16, 1: 32}.get(dtype_bytes, 8)

    info = _tpu_info()
    vmem_cap = _vmem_capacity_bytes(info)
    num_cores = _num_tensorcores(info)
    budget = (vmem_cap * 3) // 8          # working-set budget per block

    if tile_rows is not None:
        tr = min(max(int(tile_rows), 1), rows)
        if tr < rows:
            tr = min(_round_up(tr, row_align), rows)
    else:
        tr = _pick_tile_rows(rows, hidden, dtype_bytes, budget, row_align,
                             num_cores)
        if tr is None:
            # TODO(synk): column-tile hidden (two-phase sum/sumsq + normalize)
            # in Pallas for hidden sizes whose row block exceeds the VMEM budget.
            return _layer_norm_xla(x, weight, bias, eps)

    grid = (pl.cdiv(rows, tr),)           # ragged final block: masked writeback

    # Free reshapes only -- no pad, no slice, no extra HBM passes.
    x2 = x.reshape(rows, hidden)
    w2 = weight.reshape(1, hidden)

    inv_h = 1.0 / float(hidden)

    # Full-extent last dim (legal even when hidden % 128 != 0); row tile is a
    # multiple of the sublane alignment or equals the full row extent.
    x_spec = pl.BlockSpec((tr, hidden), lambda i: (i, 0))
    vec_spec = pl.BlockSpec((1, hidden), lambda i: (0, 0))
    out_spec = pl.BlockSpec((tr, hidden), lambda i: (i, 0))

    compiler_params = pltpu.CompilerParams(
        dimension_semantics=("parallel",),
        vmem_limit_bytes=int((vmem_cap * 3) // 4),
    )

    if bias is not None:
        b2 = bias.reshape(1, hidden)
        kernel = functools.partial(_ln_kernel_bias, inv_h=inv_h, eps=eps)
        in_specs = [x_spec, vec_spec, vec_spec]
        args = (x2, w2, b2)
    else:
        kernel = functools.partial(_ln_kernel_nobias, inv_h=inv_h, eps=eps)
        in_specs = [x_spec, vec_spec]
        args = (x2, w2)

    out2 = pl.pallas_call(
        kernel,
        out_shape=jax.ShapeDtypeStruct((rows, hidden), dtype),
        grid_spec=pltpu.PrefetchScalarGridSpec(
            num_scalar_prefetch=0,
            grid=grid,
            in_specs=in_specs,
            out_specs=out_spec,
        ),
        compiler_params=compiler_params,
    )(*args)

    return out2.reshape(orig_shape)


# -------------------------------- test --------------------------------------


if __name__ == "__main__":
    key = jax.random.PRNGKey(0)
    kx, kw, kb, kx2 = jax.random.split(key, 4)

    batch, seq, hidden = 2, 8, 32
    x = jax.random.normal(kx, (batch, seq, hidden), dtype=jnp.float32)
    # Non-trivial affine params (module init is ones/zeros; perturb to
    # exercise the affine path deterministically).
    weight = 1.0 + 0.1 * jax.random.normal(kw, (hidden,), dtype=jnp.float32)
    bias = 0.1 * jax.random.normal(kb, (hidden,), dtype=jnp.float32)

    out = layer_norm(x, weight, bias)        # bias=True case
    out_nb = layer_norm(x, weight, None)     # bias=False case

    # Ragged-row case (rows=21 not a multiple of the 8-row tile) with a DC
    # offset, exercising masked tail writeback + centered-variance numerics.
    x_r = 3.0 + jax.random.normal(kx2, (3, 7, 48), dtype=jnp.float32)
    w_r = jnp.ones((48,), jnp.float32)
    b_r = jnp.zeros((48,), jnp.float32)
    out_r = layer_norm(x_r, w_r, b_r, tile_rows=8)

    jax.block_until_ready((out, out_nb, out_r))

    # Pure-JAX reference (PyTorch semantics: biased var, eps inside rsqrt).
    def ref_ln(xv, wv, bv):
        mean = jnp.mean(xv, axis=-1, keepdims=True)
        var = jnp.mean((xv - mean) ** 2, axis=-1, keepdims=True)
        y = (xv - mean) * jax.lax.rsqrt(var + 1e-5) * wv
        return y + bv if bv is not None else y

    assert jnp.allclose(out, ref_ln(x, weight, bias), atol=1e-4, rtol=1e-4)
    assert jnp.allclose(out_nb, ref_ln(x, weight, None), atol=1e-4, rtol=1e-4)
    assert jnp.allclose(out_r, ref_ln(x_r, w_r, b_r), atol=1e-4, rtol=1e-4)

    print("KERNEL_OK")
</pallas_src>

<mosaic_0001>
module attributes {stable_mosaic.version = 11 : i64} {
  func.func @_ln_kernel_bias(%arg0: i32, %arg1: memref<16x32xf32, #tpu.memory_space<vmem>>, %arg2: memref<1x32xf32, #tpu.memory_space<vmem>>, %arg3: memref<1x32xf32, #tpu.memory_space<vmem>>, %arg4: memref<16x32xf32, #tpu.memory_space<vmem>>) attributes {dimension_semantics = [#tpu.dimension_semantics<parallel>], iteration_bounds = array<i64: 1>, scalar_prefetch = 0 : i64, scratch_operands = 0 : i64, tpu.core_type = #tpu.core_type<tc>, window_params = [{transform_indices = @transform_0, window_bounds = array<i64: 16, 32>}, {pipeline_mode = #tpu.pipeline_mode<synchronous>, transform_indices = @transform_1, window_bounds = array<i64: 1, 32>}, {pipeline_mode = #tpu.pipeline_mode<synchronous>, transform_indices = @transform_2, window_bounds = array<i64: 1, 32>}, {transform_indices = @transform_3, window_bounds = array<i64: 16, 32>}]} {
    %c0 = arith.constant 0 : index
    %c0_0 = arith.constant 0 : index
    %0 = vector.load %arg1[%c0, %c0_0] : memref<16x32xf32, #tpu.memory_space<vmem>>, vector<16x32xf32>
    %cst = arith.constant dense<0.000000e+00> : vector<16xf32>
    %1 = vector.multi_reduction <add>, %0, %cst [1] : vector<16x32xf32> to vector<16xf32>
    %2 = vector.shape_cast %1 : vector<16xf32> to vector<16x1xf32>
    %cst_1 = arith.constant 3.125000e-02 : f32
    %3 = vector.broadcast %cst_1 : f32 to vector<16x1xf32>
    %4 = arith.mulf %2, %3 : vector<16x1xf32>
    %5 = vector.broadcast %4 : vector<16x1xf32> to vector<16x32xf32>
    %6 = arith.subf %0, %5 : vector<16x32xf32>
    %7 = arith.mulf %6, %6 : vector<16x32xf32>
    %cst_2 = arith.constant dense<0.000000e+00> : vector<16xf32>
    %8 = vector.multi_reduction <add>, %7, %cst_2 [1] : vector<16x32xf32> to vector<16xf32>
    %9 = vector.shape_cast %8 : vector<16xf32> to vector<16x1xf32>
    %cst_3 = arith.constant 3.125000e-02 : f32
    %10 = vector.broadcast %cst_3 : f32 to vector<16x1xf32>
    %11 = arith.mulf %9, %10 : vector<16x1xf32>
    %cst_4 = arith.constant 9.99999974E-6 : f32
    %12 = vector.broadcast %cst_4 : f32 to vector<16x1xf32>
    %13 = arith.addf %11, %12 : vector<16x1xf32>
    %14 = math.rsqrt %13 : vector<16x1xf32>
    %15 = vector.broadcast %14 : vector<16x1xf32> to vector<16x32xf32>
    %16 = arith.mulf %6, %15 : vector<16x32xf32>
    %c0_5 = arith.constant 0 : index
    %c0_6 = arith.constant 0 : index
    %17 = vector.load %arg2[%c0_5, %c0_6] : memref<1x32xf32, #tpu.memory_space<vmem>>, vector<1x32xf32>
    %18 = vector.broadcast %17 : vector<1x32xf32> to vector<16x32xf32>
    %19 = arith.mulf %16, %18 : vector<16x32xf32>
    %c0_7 = arith.constant 0 : index
    %c0_8 = arith.constant 0 : index
    %20 = vector.load %arg3[%c0_7, %c0_8] : memref<1x32xf32, #tpu.memory_space<vmem>>, vector<1x32xf32>
    %21 = vector.broadcast %20 : vector<1x32xf32> to vector<16x32xf32>
    %22 = arith.addf %19, %21 : vector<16x32xf32>
    %c0_9 = arith.constant 0 : index
    %c0_10 = arith.constant 0 : index
    %23 = vector.load %arg4[%c0_9, %c0_10] : memref<16x32xf32, #tpu.memory_space<vmem>>, vector<16x32xf32>
    tpu.vector_store %arg4[%c0_9, %c0_10], %22 {strides = array<i32>} : memref<16x32xf32, #tpu.memory_space<vmem>>, vector<16x32xf32>,
    return
  }
  func.func @transform_0(%arg0: i32) -> (i32, i32) {
    %c0_i32 = arith.constant 0 : i32
    %c0_i32_0 = arith.constant 0 : i32
    return %arg0, %c0_i32 : i32, i32
  }
  func.func @transform_1(%arg0: i32) -> (i32, i32) {
    %c0_i32 = arith.constant 0 : i32
    %c0_i32_0 = arith.constant 0 : i32
    %c0_i32_1 = arith.constant 0 : i32
    return %c0_i32, %c0_i32_0 : i32, i32
  }
  func.func @transform_2(%arg0: i32) -> (i32, i32) {
    %c0_i32 = arith.constant 0 : i32
    %c0_i32_0 = arith.constant 0 : i32
    %c0_i32_1 = arith.constant 0 : i32
    return %c0_i32, %c0_i32_0 : i32, i32
  }
  func.func @transform_3(%arg0: i32) -> (i32, i32) {
    %c0_i32 = arith.constant 0 : i32
    %c0_i32_0 = arith.constant 0 : i32
    return %arg0, %c0_i32 : i32, i32
  }
}

</mosaic_0001>

<llo_original>
// kernel: tpu_custom_call.1
$region0: #{tpu_custom_call.1}
  #allocation0 [shape = 'u32[]', space=smem, size = 0x4, offset = 0x4, fixed_abs, tag = 'smem constant byte address 0x4 - core index']
  #allocation1 [shape = 'u32[144,128]{1,0:T(1,128)}', space=vmem, size = 0x12000, scoped, tag = 'internal scratch']
  %s0 = inlined_call_operand.hbm [shape: f32[16,32], index: 0, kind: input, shape index: {}]
  %s1 = inlined_call_operand.vmem [shape: f32[1,32], index: 1, kind: input, shape index: {}]
  %s2 = inlined_call_operand.vmem [shape: f32[1,32], index: 2, kind: input, shape index: {}]
  %s3 = inlined_call_operand.hbm [shape: f32[16,32], index: 3, kind: output, shape index: {}]
  %s4 = sld [smem:[#allocation0]]
  $region26: #{tpu_custom_call.1} parent=0
    _
  %s6 = ssub.s32 1, %s4
  %s7 = scalar_select 0, %s6, %s4
  $region1: #{tpu_custom_call.1} parent=0
    #allocation2 [shape = 'u8[8192]{0}', space=vmem, size = 0x2000, scoped, tag = 'input window, operand 0, single buffered']
    #allocation3 [shape = 's32[1]{0}', space=sflag, size = 0x4, scoped, tag = 'scoped memory for tpu_custom_call.1']
    #allocation4 [shape = 's32[1]{0}', space=sflag, size = 0x4, scoped, tag = 'scoped memory for tpu_custom_call.1']
    #allocation5 [shape = 'u8[8192]{0}', space=vmem, size = 0x2000, scoped, tag = 'output window, operand 0, single buffered']
    %8 = vsyncpa [#allocation3], 0
    %9 = vsyncpa [#allocation4], 0
    // Predicated region
    $region2: #{tpu_custom_call.1} parent=1 // pred_check
      _
    $region3: #{tpu_custom_call.1} parent=1 // pred_check_branch
      %11 = sbr.rel (0) target = $region5
    $region4: #{tpu_custom_call.1} parent=1 // pred_region
      %s13 = ssub.s32 256, 256
      %14 = vsyncadd [#allocation3], %s13
      %s15 = sshll.u32 [#allocation2], 4
      %s16 = int_to_ptr.vmem [resolvable:$true] %s15
      %21 = dma.hbm_to_vmem [thread:$0]  %s0, 256, %s16, [#allocation3], 128, 128, 8
    $region5: #{tpu_custom_call.1} parent=1 // pred_fallthru
      _
    // Predicated region
    $region6: #{tpu_custom_call.1} parent=1 // pred_check
      _
    $region7: #{tpu_custom_call.1} parent=1 // pred_check_branch
      %23 = sbr.rel (0) target = $region9
    $region8: #{tpu_custom_call.1} parent=1 // pred_region
      _
    $region9: #{tpu_custom_call.1} parent=1 // pred_fallthru
      _
    // Predicated region
    $region10: #{tpu_custom_call.1} parent=1 // pred_check
      _
    $region11: #{tpu_custom_call.1} parent=1 // pred_check_branch
      %25 = sbr.rel (0) target = $region13
    $region12: #{tpu_custom_call.1} parent=1 // pred_region
      _
    $region13: #{tpu_custom_call.1} parent=1 // pred_fallthru
      _
    // Predicated region
    $region14: #{tpu_custom_call.1} parent=1 // pred_check
      _
    $region15: #{tpu_custom_call.1} parent=1 // pred_check_branch
      %27 = sbr.rel (0) target = $region17
    $region16: #{tpu_custom_call.1} parent=1 // pred_region
      %28 = dma.done [#allocation3], 256
    $region17: #{tpu_custom_call.1} parent=1 // pred_fallthru
      _
    %v29 = vld [vmem:[#allocation2] sm:$0xff]
    %v30 = vld [vmem:[#allocation2 + $0x8] sm:$0xff]
    %vm31 = vcmask 261120
    %v32 = vsel %vm31, %v29, 0.0
    %33 = vadd.xlane.f32.xlu0 %v32
    %v34 = vpop.xlane.xlu0 %33
    %v35 = vsel %vm31, %v30, 0.0
    %36 = vadd.xlane.f32.xlu0 %v35
    %v37 = vpop.xlane.xlu0 %36
    %v38 = vmul.f32 %v34, 0.03125
    %v39 = vmul.f32 %v37, 0.03125
    %v40 = vsub.f32 %v29, %v38
    %v41 = vsub.f32 %v30, %v39
    %v42 = vmul.f32 %v40, %v40
    %v43 = vmul.f32 %v41, %v41
    %v44 = vsel %vm31, %v42, 0.0
    %45 = vadd.xlane.f32.xlu0 %v44
    %v46 = vpop.xlane.xlu0 %45
    %v47 = vsel %vm31, %v43, 0.0
    %48 = vadd.xlane.f32.xlu0 %v47
    %v49 = vpop.xlane.xlu0 %48
    %v50 = vmul.f32 %v46, 0.03125
    %v51 = vmul.f32 %v49, 0.03125
    %v52 = vadd.f32 %v50, 1e-05
    %v53 = vadd.f32 %v51, 1e-05
    %v54 = vrsqrt.pop %v52
    %v55 = vrsqrt.pop %v53
    %v56 = vmul.f32 %v40, %v54
    %v57 = vmul.f32 %v41, %v55
    %v58 = vld [vmem:[%s1] sm:$0x1]
    %v60 = vlaneseq
    %v61 = vshrl.u32 %v60, 7
    %v62 = vsub.s32 0, %v61
    %v63 = vrot.slane %v58, %v62
    %v65 = vmul.f32 %v56, %v63
    %v66 = vmul.f32 %v57, %v63
    %v67 = vld [vmem:[%s2] sm:$0x1]
    %v69 = vlaneseq
    %v70 = vshrl.u32 %v69, 7
    %v71 = vsub.s32 0, %v70
    %v72 = vrot.slane %v67, %v71
    %v74 = vadd.f32 %v65, %v72
    %v75 = vadd.f32 %v66, %v72
    %76 = vst.msk [vmem:[#allocation5] sm:$0xff] %vm31, %v74
    %77 = vst.msk [vmem:[#allocation5 + $0x8] sm:$0xff] %vm31, %v75
    // Predicated region
    $region18: #{tpu_custom_call.1} parent=1 // pred_check
      _
    $region19: #{tpu_custom_call.1} parent=1 // pred_check_branch
      %79 = sbr.rel (0) target = $region21
    $region20: #{tpu_custom_call.1} parent=1 // pred_region
      %s81 = ssub.s32 256, 256
      %82 = vsyncadd [#allocation4], %s81
      %s83 = sshll.u32 [#allocation5], 4
      %s84 = int_to_ptr.vmem [resolvable:$true] %s83
      %89 = dma.vmem_to_hbm [thread:$0]  %s84, 256, %s3, [#allocation4], 128, 128, 8
    $region21: #{tpu_custom_call.1} parent=1 // pred_fallthru
      _
    // Predicated region
    $region22: #{tpu_custom_call.1} parent=1 // pred_check
      _
    $region23: #{tpu_custom_call.1} parent=1 // pred_check_branch
      %91 = sbr.rel (0) target = $region25
    $region24: #{tpu_custom_call.1} parent=1 // pred_region
      %92 = dma.done [#allocation4], 256
    $region25: #{tpu_custom_call.1} parent=1 // pred_fallthru
      _
    %93 = vsyncpa [#allocation3], 1
    %94 = vsyncpa [#allocation4], 1

</llo_original>
